<compile_context>
chip_gen: v5e
topology: v5e:2x2
jax: 0.10.0
libtpu: 0.0.40
codegen_flags: <defaults>
</compile_context>

<pallas_src>
import functools
import math

import numpy as np
import jax
import jax.numpy as jnp
from jax.experimental import pallas as pl
from jax.experimental.pallas import tpu as pltpu

# ----------------------------- config (ROIHead.__init__) --------------------
NUM_CLASSES = 8             # config.num_classes  (class 0 = background)
IN_CHANNELS = 8             # config.backbone_out_channels
POOL_SIZE = 4               # config.roi_pool_size
FC_INNER_DIM = 128          # config.fc_inner_dim
NMS_THRESHOLD = 0.5         # config.roi_nms_threshold
TOPK_DETECTIONS = 100       # config.roi_topk_detections
LOW_SCORE_THRESHOLD = 0.05  # config.roi_score_threshold
FC_IN = IN_CHANNELS * POOL_SIZE * POOL_SIZE   # 128
BBOX_XFORM_CLIP = math.log(1000.0 / 16.0)

C = NUM_CLASSES
OUT_ROWS = 5 * C            # packed rows: [softmax | x1 | y1 | x2 | y2]


# ----------------------------- Pallas kernel --------------------------------
def _make_kernel(img_h, img_w):
    img_h = float(img_h)
    img_w = float(img_w)

    def kernel(pooled_ref, props_ref, w6_ref, b6_ref, w7_ref, b7_ref,
               wh_ref, bh_ref, out_ref):
        # Transposed pipeline: rows = feature/class channels, lanes = ROI rows.
        # ---- fc6 / fc7 + ReLU (bf16 MXU matmuls, f32 accumulation) ----
        h6 = jnp.maximum(
            jnp.dot(w6_ref[...], pooled_ref[...],
                    preferred_element_type=jnp.float32) + b6_ref[...], 0.0)
        h7 = jnp.maximum(
            jnp.dot(w7_ref[...], h6.astype(jnp.bfloat16),
                    preferred_element_type=jnp.float32) + b7_ref[...], 0.0)

        # ---- fused classification + bbox-regression head (single matmul) ----
        heads = (jnp.dot(wh_ref[...], h7.astype(jnp.bfloat16),
                         preferred_element_type=jnp.float32)
                 + bh_ref[...])                                   # (5C, TM) dense

        cls = heads[0 * C:1 * C, :]                               # (C, TM)
        dx = heads[1 * C:2 * C, :]
        dy = heads[2 * C:3 * C, :]
        dw = jnp.minimum(heads[3 * C:4 * C, :], BBOX_XFORM_CLIP)
        dh = jnp.minimum(heads[4 * C:5 * C, :], BBOX_XFORM_CLIP)

        # ---- softmax over classes (sublane reduce on one (8, TM) slab) ----
        m = jnp.max(cls, axis=0, keepdims=True)                   # (1, TM)
        e = jnp.exp(cls - m)
        sm = e / jnp.sum(e, axis=0, keepdims=True)                # exact; tiny

        # ---- apply_regression_pred_to_anchors_or_proposals ----
        px1 = props_ref[0:1, :]                                   # dense (1, TM)
        py1 = props_ref[1:2, :]
        px2 = props_ref[2:3, :]
        py2 = props_ref[3:4, :]
        w = px2 - px1
        h = py2 - py1
        cx = px1 + 0.5 * w
        cy = py1 + 0.5 * h

        pcx = dx * w + cx                                         # (C, TM)
        pcy = dy * h + cy
        pw = jnp.exp(dw) * w
        ph = jnp.exp(dh) * h

        # clamp_boxes_to_image_boundary
        x1 = jnp.clip(pcx - 0.5 * pw, 0.0, img_w)
        y1 = jnp.clip(pcy - 0.5 * ph, 0.0, img_h)
        x2 = jnp.clip(pcx + 0.5 * pw, 0.0, img_w)
        y2 = jnp.clip(pcy + 0.5 * ph, 0.0, img_h)

        # ---- packed transposed output, five aligned (8, TM) stores ----
        out_ref[0 * C:1 * C, :] = sm
        out_ref[1 * C:2 * C, :] = x1
        out_ref[2 * C:3 * C, :] = y1
        out_ref[3 * C:4 * C, :] = x2
        out_ref[4 * C:5 * C, :] = y2

    return kernel


def _choose_tile(n):
    """ROI-lane tile: 128 floor; up to 512 rows/step; >=2 grid steps when possible
    so dimension_semantics=("parallel",) shards ROI tiles over v7x's two TCs."""
    n128 = max(128, ((n + 127) // 128) * 128)
    if n128 == 128:
        return 128, 128
    tile = max(128, min(512, ((n128 // 2) // 128) * 128))
    n_pad = ((n128 + tile - 1) // tile) * tile
    return tile, n_pad


def roi_head_pallas(pooled_t, props_t, params, image_shape, tile):
    """pooled_t: (FC_IN, n_pad) bf16, props_t: (4, n_pad) f32; n_pad % tile == 0."""
    n_pad = pooled_t.shape[1]
    grid = (n_pad // tile,)

    def lanes(i):      # ROI-lane-tiled arrays
        return (0, i)

    def resident(i):   # weights / biases stay resident across grid steps
        return (0, 0)

    in_specs = [
        pl.BlockSpec((FC_IN, tile), lanes),                    # pooled_T
        pl.BlockSpec((4, tile), lanes),                        # proposals_T
        pl.BlockSpec((FC_INNER_DIM, FC_IN), resident),         # w6  (out, in)
        pl.BlockSpec((FC_INNER_DIM, 1), resident),             # b6
        pl.BlockSpec((FC_INNER_DIM, FC_INNER_DIM), resident),  # w7
        pl.BlockSpec((FC_INNER_DIM, 1), resident),             # b7
        pl.BlockSpec((OUT_ROWS, FC_INNER_DIM), resident),      # fused head weight
        pl.BlockSpec((OUT_ROWS, 1), resident),                 # fused head bias
    ]
    out_specs = pl.BlockSpec((OUT_ROWS, tile), lanes)
    out_shape = jax.ShapeDtypeStruct((OUT_ROWS, n_pad), jnp.float32)

    flops = 2 * n_pad * (FC_IN * FC_INNER_DIM
                         + FC_INNER_DIM * FC_INNER_DIM
                         + FC_INNER_DIM * OUT_ROWS)
    transcendentals = n_pad * 3 * C                            # softmax + exp(dw/dh)
    weight_bytes = sum(int(params[k].size) * params[k].dtype.itemsize
                       for k in ("w6", "b6", "w7", "b7", "whead", "bhead"))
    bytes_accessed = (pooled_t.size * pooled_t.dtype.itemsize
                      + props_t.size * 4 + weight_bytes + OUT_ROWS * n_pad * 4)

    fn = pl.pallas_call(
        _make_kernel(image_shape[0], image_shape[1]),
        grid=grid,
        in_specs=in_specs,
        out_specs=out_specs,
        out_shape=out_shape,
        compiler_params=pltpu.CompilerParams(
            dimension_semantics=("parallel",),        # v7x: shard ROI tiles over 2 TCs
            vmem_limit_bytes=8 * 1024 * 1024,         # footprint < 1 MiB; default 2-deep pipeline
        ),
        cost_estimate=pl.CostEstimate(
            flops=flops, transcendentals=transcendentals,
            bytes_accessed=bytes_accessed),
    )
    return fn(pooled_t, props_t,
              params["w6"], params["b6"], params["w7"], params["b7"],
              params["whead"], params["bhead"])


# ----------------------------- ROI pooling (glue, plain JAX) -----------------
# TODO(synk): could be fused into the Pallas kernel (feature map fits in VMEM,
# bin boundaries scalar-prefetched); kept in XLA but jitted with the kernel so
# `pooled` never leaves the device.  Factored two-stage masked max (H then W)
# instead of 16x full (N,C,H,W) per-bin masks.
def roi_pool_jax(feat, rois, pool_size, spatial_scale):
    """torchvision.ops.roi_pool semantics (quantized). feat: (C,H,W), rois: (N,4)."""
    c, hgt, wid = feat.shape
    n = rois.shape[0]

    def rnd(v):  # round-half-away-from-zero for non-negative coords
        return jnp.floor(v * spatial_scale + 0.5)

    x1 = rnd(rois[:, 0]); y1 = rnd(rois[:, 1])
    x2 = rnd(rois[:, 2]); y2 = rnd(rois[:, 3])
    roi_w = jnp.maximum(x2 - x1 + 1.0, 1.0)
    roi_h = jnp.maximum(y2 - y1 + 1.0, 1.0)
    bin_w = roi_w / pool_size
    bin_h = roi_h / pool_size

    p = jnp.arange(pool_size, dtype=jnp.float32)
    hstart = jnp.clip(jnp.floor(p[None, :] * bin_h[:, None]) + y1[:, None], 0.0, float(hgt))
    hend = jnp.clip(jnp.ceil((p[None, :] + 1.0) * bin_h[:, None]) + y1[:, None], 0.0, float(hgt))
    wstart = jnp.clip(jnp.floor(p[None, :] * bin_w[:, None]) + x1[:, None], 0.0, float(wid))
    wend = jnp.clip(jnp.ceil((p[None, :] + 1.0) * bin_w[:, None]) + x1[:, None], 0.0, float(wid))

    h_idx = jnp.arange(hgt, dtype=jnp.float32)
    w_idx = jnp.arange(wid, dtype=jnp.float32)
    hmask = (h_idx[None, None, :] >= hstart[:, :, None]) & (h_idx[None, None, :] < hend[:, :, None])  # (N,P,H)
    wmask = (w_idx[None, None, :] >= wstart[:, :, None]) & (w_idx[None, None, :] < wend[:, :, None])  # (N,P,W)

    neg = jnp.float32(-jnp.inf)
    # stage 1: reduce H with per-(roi, bin-row) masks -> (N, Ph, C, W)
    s1 = jnp.max(jnp.where(hmask[:, :, None, :, None], feat[None, None], neg), axis=3)
    # stage 2: reduce W with per-(roi, bin-col) masks -> (N, Ph, Pw, C)
    s2 = jnp.max(jnp.where(wmask[:, None, :, None, :], s1[:, :, None], neg), axis=4)

    empty = (~jnp.any(hmask, axis=2))[:, :, None] | (~jnp.any(wmask, axis=2))[:, None, :]  # (N,Ph,Pw)
    pooled = jnp.where(empty[:, :, :, None], 0.0, s2)                                      # (N,Ph,Pw,C)
    pooled = jnp.transpose(pooled, (0, 3, 1, 2)).reshape(n, c * pool_size * pool_size)     # flatten(1)
    return pooled


# ----------------------------- device-side forward (jitted) ------------------
@functools.partial(jax.jit, static_argnames=("image_shape",))
def _roi_head_device(feat, proposals, params, image_shape):
    fh, fw = feat.shape[-2], feat.shape[-1]
    possible_scales = []
    for s1, s2 in zip((fh, fw), image_shape):
        approx = float(s1) / float(s2)
        possible_scales.append(2.0 ** round(math.log2(approx)))
    assert possible_scales[0] == possible_scales[1]

    n = proposals.shape[0]
    tile, n_pad = _choose_tile(n)

    pooled = roi_pool_jax(feat[0], proposals, POOL_SIZE, possible_scales[0])  # (n, FC_IN)
    pooled_t = jnp.pad(pooled.T, ((0, 0), (0, n_pad - n))).astype(jnp.bfloat16)  # (FC_IN, n_pad)

    # pad proposals with a valid dummy box so exp(dw)*w on pad lanes stays finite
    dummy = jnp.tile(jnp.array([[0.0], [0.0], [1.0], [1.0]], jnp.float32),
                     (1, n_pad - n))
    props_t = jnp.concatenate([proposals.T.astype(jnp.float32), dummy], axis=1)  # (4, n_pad)

    packed = roi_head_pallas(pooled_t, props_t, params, image_shape, tile)  # (5C, n_pad)
    return packed


# ----------------------------- post-processing (glue, numpy) -----------------
def _nms_np(boxes, scores, thr):
    order = np.argsort(-scores)
    keep = []
    areas = (boxes[:, 2] - boxes[:, 0]) * (boxes[:, 3] - boxes[:, 1])
    while order.size:
        i = order[0]
        keep.append(i)
        if order.size == 1:
            break
        rest = order[1:]
        xx1 = np.maximum(boxes[i, 0], boxes[rest, 0])
        yy1 = np.maximum(boxes[i, 1], boxes[rest, 1])
        xx2 = np.minimum(boxes[i, 2], boxes[rest, 2])
        yy2 = np.minimum(boxes[i, 3], boxes[rest, 3])
        inter = np.maximum(xx2 - xx1, 0.0) * np.maximum(yy2 - yy1, 0.0)
        iou = inter / (areas[i] + areas[rest] - inter + 1e-12)
        order = rest[iou <= thr]
    return np.asarray(keep, dtype=np.int64)


def filter_predictions_np(boxes, labels, scores):
    # TODO(synk): dynamic-shape filtering (score thresh / per-class NMS / topK)
    # has no clean Pallas equivalent; kept on host.
    keep = scores > LOW_SCORE_THRESHOLD
    boxes, scores, labels = boxes[keep], scores[keep], labels[keep]
    ws = boxes[:, 2] - boxes[:, 0]
    hs = boxes[:, 3] - boxes[:, 1]
    keep = (ws >= 16) & (hs >= 16)
    boxes, scores, labels = boxes[keep], scores[keep], labels[keep]
    keep_mask = np.zeros(scores.shape[0], dtype=bool)
    for cid in np.unique(labels):
        idx = np.where(labels == cid)[0]
        k = _nms_np(boxes[idx], scores[idx], NMS_THRESHOLD)
        keep_mask[idx[k]] = True
    keep_idx = np.where(keep_mask)[0]
    order = keep_idx[np.argsort(-scores[keep_idx], kind="stable")]
    keep = order[:TOPK_DETECTIONS]
    return boxes[keep], labels[keep], scores[keep]


# ----------------------------- forward (eval path) ---------------------------
def roi_head_forward(feat, proposals, image_shape, params):
    n = proposals.shape[0]
    packed = _roi_head_device(feat, proposals, params,
                              tuple(int(s) for s in image_shape))  # (5C, n_pad)

    pred_scores_full = packed[0 * C:1 * C, :n].T          # softmax  (N, C)
    x1 = packed[1 * C:2 * C, :n].T
    y1 = packed[2 * C:3 * C, :n].T
    x2 = packed[3 * C:4 * C, :n].T
    y2 = packed[4 * C:5 * C, :n].T
    pred_boxes_full = jnp.stack([x1, y1, x2, y2], axis=2)  # (N, C, 4)

    num_boxes, num_classes = pred_scores_full.shape
    pred_labels_full = jnp.broadcast_to(
        jnp.arange(num_classes)[None, :], (num_boxes, num_classes))

    pred_boxes = pred_boxes_full[:, 1:].reshape(-1, 4)
    pred_scores = pred_scores_full[:, 1:].reshape(-1)
    pred_labels = pred_labels_full[:, 1:].reshape(-1)

    out = {
        "unfiltered_boxes": pred_boxes,
        "unfiltered_scores": pred_scores,
        "unfiltered_labels": pred_labels,
    }
    b, l, s = filter_predictions_np(
        np.asarray(pred_boxes), np.asarray(pred_labels), np.asarray(pred_scores))
    out["boxes"], out["labels"], out["scores"] = b, l, s
    return out
    # TODO(synk): training branch (proposal sampling, cross-entropy, smooth-L1)
    # not implemented; module evaluated in eval mode.


# ----------------------------- parameters ------------------------------------
def init_params(key):
    k = jax.random.split(key, 4)
    # torch nn.Linear layout (out_features, in_features) -- exactly what the
    # transposed kernel consumes (it computes W @ x^T).
    w6 = 0.01 * jax.random.normal(k[0], (FC_INNER_DIM, FC_IN), jnp.float32)
    b6 = jnp.zeros((FC_INNER_DIM, 1), jnp.float32)
    w7 = 0.01 * jax.random.normal(k[1], (FC_INNER_DIM, FC_INNER_DIM), jnp.float32)
    b7 = jnp.zeros((FC_INNER_DIM, 1), jnp.float32)
    wc = 0.01 * jax.random.normal(k[2], (NUM_CLASSES, FC_INNER_DIM), jnp.float32)
    bc = jnp.zeros((NUM_CLASSES,), jnp.float32)
    wb = 0.001 * jax.random.normal(k[3], (NUM_CLASSES * 4, FC_INNER_DIM), jnp.float32)
    bb = jnp.zeros((NUM_CLASSES * 4,), jnp.float32)

    # Fused head (coordinate-major rows):
    #   rows [0:C)              -> cls logits            (cls_layer.weight)
    #   rows [C*(1+k):C*(2+k))  -> coord-k deltas, classes in order
    #                              (bbox_reg_layer.weight rows class*4 + k)
    whead = jnp.concatenate([wc] + [wb[kk::4, :] for kk in range(4)], axis=0)  # (5C, HID)
    bhead = jnp.concatenate([bc] + [bb[kk::4] for kk in range(4)])[:, None]    # (5C, 1)

    return dict(
        w6=w6.astype(jnp.bfloat16), b6=b6,
        w7=w7.astype(jnp.bfloat16), b7=b7,
        whead=whead.astype(jnp.bfloat16), bhead=bhead,
    )


# ----------------------------- main -------------------------------------------
if __name__ == "__main__":
    key = jax.random.PRNGKey(0)
    kf, kp1, kp2, kparam = jax.random.split(key, 4)

    image_shape = (32, 32)                                   # (H_img, W_img)
    feat = jax.random.normal(kf, (1, IN_CHANNELS, 16, 16), jnp.float32)  # NCHW
    num_proposals = 16
    xy1 = jax.random.uniform(kp1, (num_proposals, 2), minval=0.0, maxval=12.0)
    wh = jax.random.uniform(kp2, (num_proposals, 2), minval=8.0, maxval=20.0)
    proposals = jnp.concatenate(
        [xy1, jnp.minimum(xy1 + wh, 31.0)], axis=1).astype(jnp.float32)  # (N,4) xyxy

    params = init_params(kparam)

    out = roi_head_forward(feat, proposals, image_shape, params)
    jax.block_until_ready(out["unfiltered_boxes"])
    jax.block_until_ready(out["unfiltered_scores"])
    jax.block_until_ready(out["unfiltered_labels"])
    print("KERNEL_OK")
</pallas_src>

<mosaic_0001>
module attributes {stable_mosaic.version = 11 : i64} {
  func.func @kernel(%arg0: i32, %arg1: memref<128x128xbf16, #tpu.memory_space<vmem>>, %arg2: memref<4x128xf32, #tpu.memory_space<vmem>>, %arg3: memref<128x128xbf16, #tpu.memory_space<vmem>>, %arg4: memref<128x1xf32, #tpu.memory_space<vmem>>, %arg5: memref<128x128xbf16, #tpu.memory_space<vmem>>, %arg6: memref<128x1xf32, #tpu.memory_space<vmem>>, %arg7: memref<40x128xbf16, #tpu.memory_space<vmem>>, %arg8: memref<40x1xf32, #tpu.memory_space<vmem>>, %arg9: memref<40x128xf32, #tpu.memory_space<vmem>>) attributes {dimension_semantics = [#tpu.dimension_semantics<parallel>], iteration_bounds = array<i64: 1>, scalar_prefetch = 0 : i64, scratch_operands = 0 : i64, tpu.core_type = #tpu.core_type<tc>, window_params = [{transform_indices = @transform_0, window_bounds = array<i64: 128, 128>}, {transform_indices = @transform_1, window_bounds = array<i64: 4, 128>}, {pipeline_mode = #tpu.pipeline_mode<synchronous>, transform_indices = @transform_2, window_bounds = array<i64: 128, 128>}, {pipeline_mode = #tpu.pipeline_mode<synchronous>, transform_indices = @transform_3, window_bounds = array<i64: 128, 1>}, {pipeline_mode = #tpu.pipeline_mode<synchronous>, transform_indices = @transform_4, window_bounds = array<i64: 128, 128>}, {pipeline_mode = #tpu.pipeline_mode<synchronous>, transform_indices = @transform_5, window_bounds = array<i64: 128, 1>}, {pipeline_mode = #tpu.pipeline_mode<synchronous>, transform_indices = @transform_6, window_bounds = array<i64: 40, 128>}, {pipeline_mode = #tpu.pipeline_mode<synchronous>, transform_indices = @transform_7, window_bounds = array<i64: 40, 1>}, {transform_indices = @transform_8, window_bounds = array<i64: 40, 128>}]} {
    %c0 = arith.constant 0 : index
    %c0_0 = arith.constant 0 : index
    %0 = vector.load %arg3[%c0, %c0_0] : memref<128x128xbf16, #tpu.memory_space<vmem>>, vector<128x128xbf16>
    %c0_1 = arith.constant 0 : index
    %c0_2 = arith.constant 0 : index
    %1 = vector.load %arg1[%c0_1, %c0_2] : memref<128x128xbf16, #tpu.memory_space<vmem>>, vector<128x128xbf16>
    %cst = arith.constant dense<0.000000e+00> : vector<128x128xf32>
    %2 = tpu.matmul %0, %1, %cst {dimension_numbers = #tpu.dot_dimension_numbers<[1], [0], [0], [1], [0, 0, 1, 1], [], []>} : vector<128x128xbf16>, vector<128x128xbf16>, vector<128x128xf32> -> vector<128x128xf32>
    %c0_3 = arith.constant 0 : index
    %c0_4 = arith.constant 0 : index
    %3 = vector.load %arg4[%c0_3, %c0_4] : memref<128x1xf32, #tpu.memory_space<vmem>>, vector<128x1xf32>
    %4 = vector.broadcast %3 : vector<128x1xf32> to vector<128x128xf32>
    %5 = arith.addf %2, %4 : vector<128x128xf32>
    %cst_5 = arith.constant 0.000000e+00 : f32
    %6 = vector.broadcast %cst_5 : f32 to vector<128x128xf32>
    %7 = arith.maximumf %5, %6 : vector<128x128xf32>
    %c0_6 = arith.constant 0 : index
    %c0_7 = arith.constant 0 : index
    %8 = vector.load %arg5[%c0_6, %c0_7] : memref<128x128xbf16, #tpu.memory_space<vmem>>, vector<128x128xbf16>
    %9 = arith.truncf %7 : vector<128x128xf32> to vector<128x128xbf16>
    %cst_8 = arith.constant dense<0.000000e+00> : vector<128x128xf32>
    %10 = tpu.matmul %8, %9, %cst_8 {dimension_numbers = #tpu.dot_dimension_numbers<[1], [0], [0], [1], [0, 0, 1, 1], [], []>} : vector<128x128xbf16>, vector<128x128xbf16>, vector<128x128xf32> -> vector<128x128xf32>
    %c0_9 = arith.constant 0 : index
    %c0_10 = arith.constant 0 : index
    %11 = vector.load %arg6[%c0_9, %c0_10] : memref<128x1xf32, #tpu.memory_space<vmem>>, vector<128x1xf32>
    %12 = vector.broadcast %11 : vector<128x1xf32> to vector<128x128xf32>
    %13 = arith.addf %10, %12 : vector<128x128xf32>
    %cst_11 = arith.constant 0.000000e+00 : f32
    %14 = vector.broadcast %cst_11 : f32 to vector<128x128xf32>
    %15 = arith.maximumf %13, %14 : vector<128x128xf32>
    %c0_12 = arith.constant 0 : index
    %c0_13 = arith.constant 0 : index
    %16 = vector.load %arg7[%c0_12, %c0_13] : memref<40x128xbf16, #tpu.memory_space<vmem>>, vector<40x128xbf16>
    %17 = arith.truncf %15 : vector<128x128xf32> to vector<128x128xbf16>
    %cst_14 = arith.constant dense<0.000000e+00> : vector<40x128xf32>
    %18 = tpu.matmul %16, %17, %cst_14 {dimension_numbers = #tpu.dot_dimension_numbers<[1], [0], [0], [1], [0, 0, 1, 1], [], []>} : vector<40x128xbf16>, vector<128x128xbf16>, vector<40x128xf32> -> vector<40x128xf32>
    %c0_15 = arith.constant 0 : index
    %c0_16 = arith.constant 0 : index
    %19 = vector.load %arg8[%c0_15, %c0_16] : memref<40x1xf32, #tpu.memory_space<vmem>>, vector<40x1xf32>
    %20 = vector.broadcast %19 : vector<40x1xf32> to vector<40x128xf32>
    %21 = arith.addf %18, %20 : vector<40x128xf32>
    %22 = vector.extract_strided_slice %21 {offsets = [0, 0], sizes = [8, 128], strides = [1, 1]} : vector<40x128xf32> to vector<8x128xf32>
    %23 = vector.extract_strided_slice %21 {offsets = [8, 0], sizes = [8, 128], strides = [1, 1]} : vector<40x128xf32> to vector<8x128xf32>
    %24 = vector.extract_strided_slice %21 {offsets = [16, 0], sizes = [8, 128], strides = [1, 1]} : vector<40x128xf32> to vector<8x128xf32>
    %25 = vector.extract_strided_slice %21 {offsets = [24, 0], sizes = [8, 128], strides = [1, 1]} : vector<40x128xf32> to vector<8x128xf32>
    %cst_17 = arith.constant 4.13516665 : f32
    %26 = vector.broadcast %cst_17 : f32 to vector<8x128xf32>
    %27 = arith.minimumf %25, %26 : vector<8x128xf32>
    %28 = vector.extract_strided_slice %21 {offsets = [32, 0], sizes = [8, 128], strides = [1, 1]} : vector<40x128xf32> to vector<8x128xf32>
    %cst_18 = arith.constant 4.13516665 : f32
    %29 = vector.broadcast %cst_18 : f32 to vector<8x128xf32>
    %30 = arith.minimumf %28, %29 : vector<8x128xf32>
    %cst_19 = arith.constant dense<0xFF800000> : vector<128xf32>
    %31 = vector.multi_reduction <maximumf>, %22, %cst_19 [0] : vector<8x128xf32> to vector<128xf32>
    %32 = vector.shape_cast %31 : vector<128xf32> to vector<1x128xf32>
    %33 = vector.broadcast %32 : vector<1x128xf32> to vector<8x128xf32>
    %34 = arith.subf %22, %33 : vector<8x128xf32>
    %35 = math.exp %34 : vector<8x128xf32>
    %cst_20 = arith.constant dense<0.000000e+00> : vector<128xf32>
    %36 = vector.multi_reduction <add>, %35, %cst_20 [0] : vector<8x128xf32> to vector<128xf32>
    %37 = vector.shape_cast %36 : vector<128xf32> to vector<1x128xf32>
    %38 = vector.broadcast %37 : vector<1x128xf32> to vector<8x128xf32>
    %39 = arith.divf %35, %38 : vector<8x128xf32>
    %c0_21 = arith.constant 0 : index
    %c0_22 = arith.constant 0 : index
    %40 = vector.load %arg2[%c0_21, %c0_22] : memref<4x128xf32, #tpu.memory_space<vmem>>, vector<1x128xf32>
    %c1 = arith.constant 1 : index
    %c0_23 = arith.constant 0 : index
    %41 = vector.load %arg2[%c1, %c0_23] : memref<4x128xf32, #tpu.memory_space<vmem>>, vector<1x128xf32>
    %c2 = arith.constant 2 : index
    %c0_24 = arith.constant 0 : index
    %42 = vector.load %arg2[%c2, %c0_24] : memref<4x128xf32, #tpu.memory_space<vmem>>, vector<1x128xf32>
    %c3 = arith.constant 3 : index
    %c0_25 = arith.constant 0 : index
    %43 = vector.load %arg2[%c3, %c0_25] : memref<4x128xf32, #tpu.memory_space<vmem>>, vector<1x128xf32>
    %44 = arith.subf %42, %40 : vector<1x128xf32>
    %45 = arith.subf %43, %41 : vector<1x128xf32>
    %cst_26 = arith.constant 5.000000e-01 : f32
    %46 = vector.broadcast %cst_26 : f32 to vector<1x128xf32>
    %47 = arith.mulf %46, %44 : vector<1x128xf32>
    %48 = arith.addf %40, %47 : vector<1x128xf32>
    %cst_27 = arith.constant 5.000000e-01 : f32
    %49 = vector.broadcast %cst_27 : f32 to vector<1x128xf32>
    %50 = arith.mulf %49, %45 : vector<1x128xf32>
    %51 = arith.addf %41, %50 : vector<1x128xf32>
    %52 = vector.broadcast %44 : vector<1x128xf32> to vector<8x128xf32>
    %53 = arith.mulf %23, %52 : vector<8x128xf32>
    %54 = vector.broadcast %48 : vector<1x128xf32> to vector<8x128xf32>
    %55 = arith.addf %53, %54 : vector<8x128xf32>
    %56 = vector.broadcast %45 : vector<1x128xf32> to vector<8x128xf32>
    %57 = arith.mulf %24, %56 : vector<8x128xf32>
    %58 = vector.broadcast %51 : vector<1x128xf32> to vector<8x128xf32>
    %59 = arith.addf %57, %58 : vector<8x128xf32>
    %60 = math.exp %27 : vector<8x128xf32>
    %61 = vector.broadcast %44 : vector<1x128xf32> to vector<8x128xf32>
    %62 = arith.mulf %60, %61 : vector<8x128xf32>
    %63 = math.exp %30 : vector<8x128xf32>
    %64 = vector.broadcast %45 : vector<1x128xf32> to vector<8x128xf32>
    %65 = arith.mulf %63, %64 : vector<8x128xf32>
    %cst_28 = arith.constant 5.000000e-01 : f32
    %66 = vector.broadcast %cst_28 : f32 to vector<8x128xf32>
    %67 = arith.mulf %66, %62 : vector<8x128xf32>
    %68 = arith.subf %55, %67 : vector<8x128xf32>
    %cst_29 = arith.constant 0.000000e+00 : f32
    %cst_30 = arith.constant 3.200000e+01 : f32
    %69 = vector.broadcast %cst_29 : f32 to vector<8x128xf32>
    %70 = arith.maximumf %69, %68 : vector<8x128xf32>
    %71 = vector.broadcast %cst_30 : f32 to vector<8x128xf32>
    %72 = arith.minimumf %71, %70 : vector<8x128xf32>
    %cst_31 = arith.constant 5.000000e-01 : f32
    %73 = vector.broadcast %cst_31 : f32 to vector<8x128xf32>
    %74 = arith.mulf %73, %65 : vector<8x128xf32>
    %75 = arith.subf %59, %74 : vector<8x128xf32>
    %cst_32 = arith.constant 0.000000e+00 : f32
    %cst_33 = arith.constant 3.200000e+01 : f32
    %76 = vector.broadcast %cst_32 : f32 to vector<8x128xf32>
    %77 = arith.maximumf %76, %75 : vector<8x128xf32>
    %78 = vector.broadcast %cst_33 : f32 to vector<8x128xf32>
    %79 = arith.minimumf %78, %77 : vector<8x128xf32>
    %cst_34 = arith.constant 5.000000e-01 : f32
    %80 = vector.broadcast %cst_34 : f32 to vector<8x128xf32>
    %81 = arith.mulf %80, %62 : vector<8x128xf32>
    %82 = arith.addf %55, %81 : vector<8x128xf32>
    %cst_35 = arith.constant 0.000000e+00 : f32
    %cst_36 = arith.constant 3.200000e+01 : f32
    %83 = vector.broadcast %cst_35 : f32 to vector<8x128xf32>
    %84 = arith.maximumf %83, %82 : vector<8x128xf32>
    %85 = vector.broadcast %cst_36 : f32 to vector<8x128xf32>
    %86 = arith.minimumf %85, %84 : vector<8x128xf32>
    %cst_37 = arith.constant 5.000000e-01 : f32
    %87 = vector.broadcast %cst_37 : f32 to vector<8x128xf32>
    %88 = arith.mulf %87, %65 : vector<8x128xf32>
    %89 = arith.addf %59, %88 : vector<8x128xf32>
    %cst_38 = arith.constant 0.000000e+00 : f32
    %cst_39 = arith.constant 3.200000e+01 : f32
    %90 = vector.broadcast %cst_38 : f32 to vector<8x128xf32>
    %91 = arith.maximumf %90, %89 : vector<8x128xf32>
    %92 = vector.broadcast %cst_39 : f32 to vector<8x128xf32>
    %93 = arith.minimumf %92, %91 : vector<8x128xf32>
    %c0_40 = arith.constant 0 : index
    %c0_41 = arith.constant 0 : index
    %94 = vector.load %arg9[%c0_40, %c0_41] : memref<40x128xf32, #tpu.memory_space<vmem>>, vector<8x128xf32>
    tpu.vector_store %arg9[%c0_40, %c0_41], %39 {strides = array<i32>} : memref<40x128xf32, #tpu.memory_space<vmem>>, vector<8x128xf32>,
    %c8 = arith.constant 8 : index
    %c0_42 = arith.constant 0 : index
    %95 = vector.load %arg9[%c8, %c0_42] : memref<40x128xf32, #tpu.memory_space<vmem>>, vector<8x128xf32>
    tpu.vector_store %arg9[%c8, %c0_42], %72 {strides = array<i32>} : memref<40x128xf32, #tpu.memory_space<vmem>>, vector<8x128xf32>,
    %c16 = arith.constant 16 : index
    %c0_43 = arith.constant 0 : index
    %96 = vector.load %arg9[%c16, %c0_43] : memref<40x128xf32, #tpu.memory_space<vmem>>, vector<8x128xf32>
    tpu.vector_store %arg9[%c16, %c0_43], %79 {strides = array<i32>} : memref<40x128xf32, #tpu.memory_space<vmem>>, vector<8x128xf32>,
    %c24 = arith.constant 24 : index
    %c0_44 = arith.constant 0 : index
    %97 = vector.load %arg9[%c24, %c0_44] : memref<40x128xf32, #tpu.memory_space<vmem>>, vector<8x128xf32>
    tpu.vector_store %arg9[%c24, %c0_44], %86 {strides = array<i32>} : memref<40x128xf32, #tpu.memory_space<vmem>>, vector<8x128xf32>,
    %c32 = arith.constant 32 : index
    %c0_45 = arith.constant 0 : index
    %98 = vector.load %arg9[%c32, %c0_45] : memref<40x128xf32, #tpu.memory_space<vmem>>, vector<8x128xf32>
    tpu.vector_store %arg9[%c32, %c0_45], %93 {strides = array<i32>} : memref<40x128xf32, #tpu.memory_space<vmem>>, vector<8x128xf32>,
    return
  }
  func.func @transform_0(%arg0: i32) -> (i32, i32) {
    %c0_i32 = arith.constant 0 : i32
    %c0_i32_0 = arith.constant 0 : i32
    return %c0_i32, %arg0 : i32, i32
  }
  func.func @transform_1(%arg0: i32) -> (i32, i32) {
    %c0_i32 = arith.constant 0 : i32
    %c0_i32_0 = arith.constant 0 : i32
    return %c0_i32, %arg0 : i32, i32
  }
  func.func @transform_2(%arg0: i32) -> (i32, i32) {
    %c0_i32 = arith.constant 0 : i32
    %c0_i32_0 = arith.constant 0 : i32
    %c0_i32_1 = arith.constant 0 : i32
    return %c0_i32, %c0_i32_0 : i32, i32
  }
  func.func @transform_3(%arg0: i32) -> (i32, i32) {
    %c0_i32 = arith.constant 0 : i32
    %c0_i32_0 = arith.constant 0 : i32
    %c0_i32_1 = arith.constant 0 : i32
    return %c0_i32, %c0_i32_0 : i32, i32
  }
  func.func @transform_4(%arg0: i32) -> (i32, i32) {
    %c0_i32 = arith.constant 0 : i32
    %c0_i32_0 = arith.constant 0 : i32
    %c0_i32_1 = arith.constant 0 : i32
    return %c0_i32, %c0_i32_0 : i32, i32
  }
  func.func @transform_5(%arg0: i32) -> (i32, i32) {
    %c0_i32 = arith.constant 0 : i32
    %c0_i32_0 = arith.constant 0 : i32
    %c0_i32_1 = arith.constant 0 : i32
    return %c0_i32, %c0_i32_0 : i32, i32
  }
  func.func @transform_6(%arg0: i32) -> (i32, i32) {
    %c0_i32 = arith.constant 0 : i32
    %c0_i32_0 = arith.constant 0 : i32
    %c0_i32_1 = arith.constant 0 : i32
    return %c0_i32, %c0_i32_0 : i32, i32
  }
  func.func @transform_7(%arg0: i32) -> (i32, i32) {
    %c0_i32 = arith.constant 0 : i32
    %c0_i32_0 = arith.constant 0 : i32
    %c0_i32_1 = arith.constant 0 : i32
    return %c0_i32, %c0_i32_0 : i32, i32
  }
  func.func @transform_8(%arg0: i32) -> (i32, i32) {
    %c0_i32 = arith.constant 0 : i32
    %c0_i32_0 = arith.constant 0 : i32
    return %c0_i32, %arg0 : i32, i32
  }
}

</mosaic_0001>

<llo_original>
// kernel: _roi_head_device.1
$region0: #{_roi_head_device.1}
  #allocation0 [shape = 'u32[]', space=smem, size = 0x4, offset = 0x4, fixed_abs, tag = 'smem constant byte address 0x4 - core index']
  #allocation1 [shape = 'u32[72,128]{1,0:T(1,128)}', space=vmem, size = 0x9000, scoped, tag = 'internal scratch']
  %s0 = inlined_call_operand.vmem [shape: bf16[128,128], index: 0, kind: input, shape index: {}]
  %s1 = inlined_call_operand.vmem [shape: f32[4,128], index: 1, kind: input, shape index: {}]
  %s2 = inlined_call_operand.vmem [shape: bf16[128,128], index: 2, kind: input, shape index: {}]
  %s3 = inlined_call_operand.vmem [shape: f32[128,1], index: 3, kind: input, shape index: {}]
  %s4 = inlined_call_operand.vmem [shape: bf16[128,128], index: 4, kind: input, shape index: {}]
  %s5 = inlined_call_operand.vmem [shape: f32[128,1], index: 5, kind: input, shape index: {}]
  %s6 = inlined_call_operand.vmem [shape: bf16[40,128], index: 6, kind: input, shape index: {}]
  %s7 = inlined_call_operand.vmem [shape: f32[40,1], index: 7, kind: input, shape index: {}]
  %s8 = inlined_call_operand.hbm [shape: f32[40,128], index: 8, kind: output, shape index: {}]
  %s9 = sld [smem:[#allocation0]]
  $region42: #{_roi_head_device.1} parent=0
    _
  %s11 = ssub.s32 1, %s9
  %s12 = scalar_select 0, %s11, %s9
  $region1: #{_roi_head_device.1} parent=0
    #allocation2 [shape = 'u8[20480]{0}', space=vmem, size = 0x5000, scoped, tag = 'output window, operand 0, single buffered']
    #allocation3 [shape = 's32[1]{0}', space=sflag, size = 0x4, scoped, tag = 'scoped memory for _roi_head_device.1']
    %13 = vsyncpa [#allocation3], 0
    // Predicated region
    $region2: #{_roi_head_device.1} parent=1 // pred_check
      _
    $region3: #{_roi_head_device.1} parent=1 // pred_check_branch
      %15 = sbr.rel (0) target = $region5
    $region4: #{_roi_head_device.1} parent=1 // pred_region
      _
    $region5: #{_roi_head_device.1} parent=1 // pred_fallthru
      _
    // Predicated region
    $region6: #{_roi_head_device.1} parent=1 // pred_check
      _
    $region7: #{_roi_head_device.1} parent=1 // pred_check_branch
      %17 = sbr.rel (0) target = $region9
    $region8: #{_roi_head_device.1} parent=1 // pred_region
      _
    $region9: #{_roi_head_device.1} parent=1 // pred_fallthru
      _
    // Predicated region
    $region10: #{_roi_head_device.1} parent=1 // pred_check
      _
    $region11: #{_roi_head_device.1} parent=1 // pred_check_branch
      %19 = sbr.rel (0) target = $region13
    $region12: #{_roi_head_device.1} parent=1 // pred_region
      _
    $region13: #{_roi_head_device.1} parent=1 // pred_fallthru
      _
    // Predicated region
    $region14: #{_roi_head_device.1} parent=1 // pred_check
      _
    $region15: #{_roi_head_device.1} parent=1 // pred_check_branch
      %21 = sbr.rel (0) target = $region17
    $region16: #{_roi_head_device.1} parent=1 // pred_region
      _
    $region17: #{_roi_head_device.1} parent=1 // pred_fallthru
      _
    // Predicated region
    $region18: #{_roi_head_device.1} parent=1 // pred_check
      _
    $region19: #{_roi_head_device.1} parent=1 // pred_check_branch
      %23 = sbr.rel (0) target = $region21
    $region20: #{_roi_head_device.1} parent=1 // pred_region
      _
    $region21: #{_roi_head_device.1} parent=1 // pred_fallthru
      _
    // Predicated region
    $region22: #{_roi_head_device.1} parent=1 // pred_check
      _
    $region23: #{_roi_head_device.1} parent=1 // pred_check_branch
      %25 = sbr.rel (0) target = $region25
    $region24: #{_roi_head_device.1} parent=1 // pred_region
      _
    $region25: #{_roi_head_device.1} parent=1 // pred_fallthru
      _
    // Predicated region
    $region26: #{_roi_head_device.1} parent=1 // pred_check
      _
    $region27: #{_roi_head_device.1} parent=1 // pred_check_branch
      %27 = sbr.rel (0) target = $region29
    $region28: #{_roi_head_device.1} parent=1 // pred_region
      _
    $region29: #{_roi_head_device.1} parent=1 // pred_fallthru
      _
    // Predicated region
    $region30: #{_roi_head_device.1} parent=1 // pred_check
      _
    $region31: #{_roi_head_device.1} parent=1 // pred_check_branch
      %29 = sbr.rel (0) target = $region33
    $region32: #{_roi_head_device.1} parent=1 // pred_region
      _
    $region33: #{_roi_head_device.1} parent=1 // pred_fallthru
      _
    %v30 = vld [vmem:[%s2] sm:$0xf]
    %v31 = vld [vmem:[%s2 + $0x4] sm:$0xf]
    %v32 = vld [vmem:[%s2 + $0x8] sm:$0xf]
    %v33 = vld [vmem:[%s2 + $0xc] sm:$0xf]
    %v34 = vld [vmem:[%s2 + $0x10] sm:$0xf]
    %v35 = vld [vmem:[%s2 + $0x14] sm:$0xf]
    %v36 = vld [vmem:[%s2 + $0x18] sm:$0xf]
    %v37 = vld [vmem:[%s2 + $0x1c] sm:$0xf]
    %v38 = vld [vmem:[%s2 + $0x20] sm:$0xf]
    %v39 = vld [vmem:[%s2 + $0x24] sm:$0xf]
    %v40 = vld [vmem:[%s2 + $0x28] sm:$0xf]
    %v41 = vld [vmem:[%s2 + $0x2c] sm:$0xf]
    %v42 = vld [vmem:[%s2 + $0x30] sm:$0xf]
    %v43 = vld [vmem:[%s2 + $0x34] sm:$0xf]
    %v44 = vld [vmem:[%s2 + $0x38] sm:$0xf]
    %v45 = vld [vmem:[%s2 + $0x3c] sm:$0xf]
    %v46 = vld [vmem:[%s0] sm:$0xf]
    %v47 = vld [vmem:[%s0 + $0x4] sm:$0xf]
    %v48 = vld [vmem:[%s0 + $0x8] sm:$0xf]
    %v49 = vld [vmem:[%s0 + $0xc] sm:$0xf]
    %v50 = vld [vmem:[%s0 + $0x10] sm:$0xf]
    %v51 = vld [vmem:[%s0 + $0x14] sm:$0xf]
    %v52 = vld [vmem:[%s0 + $0x18] sm:$0xf]
    %v53 = vld [vmem:[%s0 + $0x1c] sm:$0xf]
    %v54 = vld [vmem:[%s0 + $0x20] sm:$0xf]
    %v55 = vld [vmem:[%s0 + $0x24] sm:$0xf]
    %v56 = vld [vmem:[%s0 + $0x28] sm:$0xf]
    %v57 = vld [vmem:[%s0 + $0x2c] sm:$0xf]
    %v58 = vld [vmem:[%s0 + $0x30] sm:$0xf]
    %v59 = vld [vmem:[%s0 + $0x34] sm:$0xf]
    %v60 = vld [vmem:[%s0 + $0x38] sm:$0xf]
    %v61 = vld [vmem:[%s0 + $0x3c] sm:$0xf]
    %v62 = vld [vmem:[%s3] sm:$0xff]
    %v63 = vld [vmem:[%s3 + $0x8] sm:$0xff]
    %v64 = vld [vmem:[%s3 + $0x10] sm:$0xff]
    %v65 = vld [vmem:[%s3 + $0x18] sm:$0xff]
    %v66 = vld [vmem:[%s3 + $0x20] sm:$0xff]
    %v67 = vld [vmem:[%s3 + $0x28] sm:$0xff]
    %v68 = vld [vmem:[%s3 + $0x30] sm:$0xff]
    %v69 = vld [vmem:[%s3 + $0x38] sm:$0xff]
    %v70 = vld [vmem:[%s3 + $0x40] sm:$0xff]
    %v71 = vld [vmem:[%s3 + $0x48] sm:$0xff]
    %v72 = vld [vmem:[%s3 + $0x50] sm:$0xff]
    %v73 = vld [vmem:[%s3 + $0x58] sm:$0xff]
    %v74 = vld [vmem:[%s3 + $0x60] sm:$0xff]
    %v75 = vld [vmem:[%s3 + $0x68] sm:$0xff]
    %v76 = vld [vmem:[%s3 + $0x70] sm:$0xff]
    %v77 = vld [vmem:[%s3 + $0x78] sm:$0xff]
    %79 = vset.pattern.permute.xlu0 0
    %80 = vperm.xlu0 %79, %v62
    %v81 = vpop.permute.xlu0 %80
    %84 = vset.pattern.permute.xlu0 0
    %85 = vperm.xlu0 %84, %v63
    %v86 = vpop.permute.xlu0 %85
    %89 = vset.pattern.permute.xlu0 0
    %90 = vperm.xlu0 %89, %v64
    %v91 = vpop.permute.xlu0 %90
    %94 = vset.pattern.permute.xlu0 0
    %95 = vperm.xlu0 %94, %v65
    %v96 = vpop.permute.xlu0 %95
    %99 = vset.pattern.permute.xlu0 0
    %100 = vperm.xlu0 %99, %v66
    %v101 = vpop.permute.xlu0 %100
    %104 = vset.pattern.permute.xlu0 0
    %105 = vperm.xlu0 %104, %v67
    %v106 = vpop.permute.xlu0 %105
    %109 = vset.pattern.permute.xlu0 0
    %110 = vperm.xlu0 %109, %v68
    %v111 = vpop.permute.xlu0 %110
    %114 = vset.pattern.permute.xlu0 0
    %115 = vperm.xlu0 %114, %v69
    %v116 = vpop.permute.xlu0 %115
    %119 = vset.pattern.permute.xlu0 0
    %120 = vperm.xlu0 %119, %v70
    %v121 = vpop.permute.xlu0 %120
    %124 = vset.pattern.permute.xlu0 0
    %125 = vperm.xlu0 %124, %v71
    %v126 = vpop.permute.xlu0 %125
    %129 = vset.pattern.permute.xlu0 0
    %130 = vperm.xlu0 %129, %v72
    %v131 = vpop.permute.xlu0 %130
    %134 = vset.pattern.permute.xlu0 0
    %135 = vperm.xlu0 %134, %v73
    %v136 = vpop.permute.xlu0 %135
    %139 = vset.pattern.permute.xlu0 0
    %140 = vperm.xlu0 %139, %v74
    %v141 = vpop.permute.xlu0 %140
    %144 = vset.pattern.permute.xlu0 0
    %145 = vperm.xlu0 %144, %v75
    %v146 = vpop.permute.xlu0 %145
    %149 = vset.pattern.permute.xlu0 0
    %150 = vperm.xlu0 %149, %v76
    %v151 = vpop.permute.xlu0 %150
    %154 = vset.pattern.permute.xlu0 0
    %155 = vperm.xlu0 %154, %v77
    %v156 = vpop.permute.xlu0 %155
    %v174 = vunpack.c.l.b16 %v30
    %v175 = vunpack.c.l.b16 %v31
    %v176 = vunpack.c.l.b16 %v32
    %v177 = vunpack.c.l.b16 %v33
    %v178 = vunpack.c.l.b16 %v34
    %v179 = vunpack.c.l.b16 %v35
    %v180 = vunpack.c.l.b16 %v36
    %v181 = vunpack.c.l.b16 %v37
    %v182 = vunpack.c.l.b16 %v38
    %v183 = vunpack.c.l.b16 %v39
    %v184 = vunpack.c.l.b16 %v40
    %v185 = vunpack.c.l.b16 %v41
    %v186 = vunpack.c.l.b16 %v42
    %v187 = vunpack.c.l.b16 %v43
    %v188 = vunpack.c.l.b16 %v44
    %v189 = vunpack.c.l.b16 %v45
    %v190 = vpack.c.b16 %v175, %v174
    %v191 = vpack.c.b16 %v177, %v176
    %v192 = vpack.c.b16 %v179, %v178
    %v193 = vpack.c.b16 %v181, %v180
    %v194 = vpack.c.b16 %v183, %v182
    %v195 = vpack.c.b16 %v185, %v184
    %v196 = vpack.c.b16 %v187, %v186
    %v197 = vpack.c.b16 %v189, %v188
    %v222 = vunpack.c.l.b16 %v46
    %v223 = vunpack.c.l.b16 %v47
    %v224 = vunpack.c.l.b16 %v48
    %v225 = vunpack.c.l.b16 %v49
    %v226 = vunpack.c.l.b16 %v50
    %v227 = vunpack.c.l.b16 %v51
    %v228 = vunpack.c.l.b16 %v52
    %v229 = vunpack.c.l.b16 %v53
    %v230 = vunpack.c.l.b16 %v54
    %v231 = vunpack.c.l.b16 %v55
    %v232 = vunpack.c.l.b16 %v56
    %v233 = vunpack.c.l.b16 %v57
    %v234 = vunpack.c.l.b16 %v58
    %v235 = vunpack.c.l.b16 %v59
    %v236 = vunpack.c.l.b16 %v60
    %v237 = vunpack.c.l.b16 %v61
    %v238 = vpack.c.b16 %v223, %v222
    %v239 = vpack.c.b16 %v225, %v224
    %v240 = vpack.c.b16 %v227, %v226
    %v241 = vpack.c.b16 %v229, %v228
    %v242 = vpack.c.b16 %v231, %v230
    %v243 = vpack.c.b16 %v233, %v232
    %v244 = vpack.c.b16 %v235, %v234
    %v245 = vpack.c.b16 %v237, %v236
    %254 = vmatpush.bf16.msra.mxu0 %v245
    %255 = vmatpush.bf16.msra.mxu0 %v244
    %256 = vmatpush.bf16.msra.mxu0 %v243
    %257 = vmatpush.bf16.msra.mxu0 %v242
    %258 = vmatpush.bf16.msra.mxu0 %v241
    %259 = vmatpush.bf16.msra.mxu0 %v240
    %260 = vmatpush.bf16.msra.mxu0 %v239
    %261 = vmatpush.bf16.msra.mxu0 %v238
    %262 = vmatmul.bf16.gmra.mxu0 %v190
    %v263 = vpop.f32.mrf.mxu0
    %v264 = vadd.f32 %v81, %v263
    %v265 = vpop.f32.mrf.mxu0
    %v266 = vadd.f32 %v86, %v265
    %267 = vmatmul.bf16.gmra.mxu0 %v191
    %v268 = vpop.f32.mrf.mxu0
    %v269 = vadd.f32 %v91, %v268
    %v270 = vpop.f32.mrf.mxu0
    %v271 = vadd.f32 %v96, %v270
    %272 = vmatmul.bf16.gmra.mxu0 %v192
    %v273 = vpop.f32.mrf.mxu0
    %v274 = vadd.f32 %v101, %v273
    %v275 = vpop.f32.mrf.mxu0
    %v276 = vadd.f32 %v106, %v275
    %277 = vmatmul.bf16.gmra.mxu0 %v193
    %v278 = vpop.f32.mrf.mxu0
    %v279 = vadd.f32 %v111, %v278
    %v280 = vpop.f32.mrf.mxu0
    %v281 = vadd.f32 %v116, %v280
    %282 = vmatmul.bf16.gmra.mxu0 %v194
    %v283 = vpop.f32.mrf.mxu0
    %v284 = vadd.f32 %v121, %v283
    %v285 = vpop.f32.mrf.mxu0
    %v286 = vadd.f32 %v126, %v285
    %287 = vmatmul.bf16.gmra.mxu0 %v195
    %v288 = vpop.f32.mrf.mxu0
    %v289 = vadd.f32 %v131, %v288
    %v290 = vpop.f32.mrf.mxu0
    %v291 = vadd.f32 %v136, %v290
    %292 = vmatmul.bf16.gmra.mxu0 %v196
    %v293 = vpop.f32.mrf.mxu0
    %v294 = vadd.f32 %v141, %v293
    %v295 = vpop.f32.mrf.mxu0
    %v296 = vadd.f32 %v146, %v295
    %297 = vmatmul.bf16.gmra.mxu0 %v197
    %v298 = vpop.f32.mrf.mxu0
    %v299 = vadd.f32 %v151, %v298
    %v300 = vpop.f32.mrf.mxu0
    %v301 = vadd.f32 %v156, %v300
    %302 = vdwg.mxu0
    %v303 = vmax.f32 %v264, 0.0
    %v304 = vmax.f32 %v266, 0.0
    %v305 = vmax.f32 %v269, 0.0
    %v306 = vmax.f32 %v271, 0.0
    %v307 = vmax.f32 %v274, 0.0
    %v308 = vmax.f32 %v276, 0.0
    %v309 = vmax.f32 %v279, 0.0
    %v310 = vmax.f32 %v281, 0.0
    %v311 = vmax.f32 %v284, 0.0
    %v312 = vmax.f32 %v286, 0.0
    %v313 = vmax.f32 %v289, 0.0
    %v314 = vmax.f32 %v291, 0.0
    %v315 = vmax.f32 %v294, 0.0
    %v316 = vmax.f32 %v296, 0.0
    %v317 = vmax.f32 %v299, 0.0
    %v318 = vmax.f32 %v301, 0.0
    %v319 = vld [vmem:[%s4] sm:$0xf]
    %v320 = vld [vmem:[%s4 + $0x4] sm:$0xf]
    %v321 = vld [vmem:[%s4 + $0x8] sm:$0xf]
    %v322 = vld [vmem:[%s4 + $0xc] sm:$0xf]
    %v323 = vld [vmem:[%s4 + $0x10] sm:$0xf]
    %v324 = vld [vmem:[%s4 + $0x14] sm:$0xf]
    %v325 = vld [vmem:[%s4 + $0x18] sm:$0xf]
    %v326 = vld [vmem:[%s4 + $0x1c] sm:$0xf]
    %v327 = vld [vmem:[%s4 + $0x20] sm:$0xf]
    %v328 = vld [vmem:[%s4 + $0x24] sm:$0xf]
    %v329 = vld [vmem:[%s4 + $0x28] sm:$0xf]
    %v330 = vld [vmem:[%s4 + $0x2c] sm:$0xf]
    %v331 = vld [vmem:[%s4 + $0x30] sm:$0xf]
    %v332 = vld [vmem:[%s4 + $0x34] sm:$0xf]
    %v333 = vld [vmem:[%s4 + $0x38] sm:$0xf]
    %v334 = vld [vmem:[%s4 + $0x3c] sm:$0xf]
    %v335 = vpack.c.bf16 %v304, %v303
    %v336 = vpack.c.bf16 %v306, %v305
    %v337 = vpack.c.bf16 %v308, %v307
    %v338 = vpack.c.bf16 %v310, %v309
    %v339 = vpack.c.bf16 %v312, %v311
    %v340 = vpack.c.bf16 %v314, %v313
    %v341 = vpack.c.bf16 %v316, %v315
    %v342 = vpack.c.bf16 %v318, %v317
    %v343 = vld [vmem:[%s5] sm:$0xff]
    %v344 = vld [vmem:[%s5 + $0x8] sm:$0xff]
    %v345 = vld [vmem:[%s5 + $0x10] sm:$0xff]
    %v346 = vld [vmem:[%s5 + $0x18] sm:$0xff]
    %v347 = vld [vmem:[%s5 + $0x20] sm:$0xff]
    %v348 = vld [vmem:[%s5 + $0x28] sm:$0xff]
    %v349 = vld [vmem:[%s5 + $0x30] sm:$0xff]
    %v350 = vld [vmem:[%s5 + $0x38] sm:$0xff]
    %v351 = vld [vmem:[%s5 + $0x40] sm:$0xff]
    %v352 = vld [vmem:[%s5 + $0x48] sm:$0xff]
    %v353 = vld [vmem:[%s5 + $0x50] sm:$0xff]
    %v354 = vld [vmem:[%s5 + $0x58] sm:$0xff]
    %v355 = vld [vmem:[%s5 + $0x60] sm:$0xff]
    %v356 = vld [vmem:[%s5 + $0x68] sm:$0xff]
    %v357 = vld [vmem:[%s5 + $0x70] sm:$0xff]
    %v358 = vld [vmem:[%s5 + $0x78] sm:$0xff]
    %360 = vset.pattern.permute.xlu0 0
    %361 = vperm.xlu0 %360, %v343
    %v362 = vpop.permute.xlu0 %361
    %365 = vset.pattern.permute.xlu0 0
    %366 = vperm.xlu0 %365, %v344
    %v367 = vpop.permute.xlu0 %366
    %370 = vset.pattern.permute.xlu0 0
    %371 = vperm.xlu0 %370, %v345
    %v372 = vpop.permute.xlu0 %371
    %375 = vset.pattern.permute.xlu0 0
    %376 = vperm.xlu0 %375, %v346
    %v377 = vpop.permute.xlu0 %376
    %380 = vset.pattern.permute.xlu0 0
    %381 = vperm.xlu0 %380, %v347
    %v382 = vpop.permute.xlu0 %381
    %385 = vset.pattern.permute.xlu0 0
    %386 = vperm.xlu0 %385, %v348
    %v387 = vpop.permute.xlu0 %386
    %390 = vset.pattern.permute.xlu0 0
    %391 = vperm.xlu0 %390, %v349
    %v392 = vpop.permute.xlu0 %391
    %395 = vset.pattern.permute.xlu0 0
    %396 = vperm.xlu0 %395, %v350
    %v397 = vpop.permute.xlu0 %396
    %400 = vset.pattern.permute.xlu0 0
    %401 = vperm.xlu0 %400, %v351
    %v402 = vpop.permute.xlu0 %401
    %405 = vset.pattern.permute.xlu0 0
    %406 = vperm.xlu0 %405, %v352
    %v407 = vpop.permute.xlu0 %406
    %410 = vset.pattern.permute.xlu0 0
    %411 = vperm.xlu0 %410, %v353
    %v412 = vpop.permute.xlu0 %411
    %415 = vset.pattern.permute.xlu0 0
    %416 = vperm.xlu0 %415, %v354
    %v417 = vpop.permute.xlu0 %416
    %420 = vset.pattern.permute.xlu0 0
    %421 = vperm.xlu0 %420, %v355
    %v422 = vpop.permute.xlu0 %421
    %425 = vset.pattern.permute.xlu0 0
    %426 = vperm.xlu0 %425, %v356
    %v427 = vpop.permute.xlu0 %426
    %430 = vset.pattern.permute.xlu0 0
    %431 = vperm.xlu0 %430, %v357
    %v432 = vpop.permute.xlu0 %431
    %435 = vset.pattern.permute.xlu0 0
    %436 = vperm.xlu0 %435, %v358
    %v437 = vpop.permute.xlu0 %436
    %v455 = vunpack.c.l.b16 %v319
    %v456 = vunpack.c.l.b16 %v320
    %v457 = vunpack.c.l.b16 %v321
    %v458 = vunpack.c.l.b16 %v322
    %v459 = vunpack.c.l.b16 %v323
    %v460 = vunpack.c.l.b16 %v324
    %v461 = vunpack.c.l.b16 %v325
    %v462 = vunpack.c.l.b16 %v326
    %v463 = vunpack.c.l.b16 %v327
    %v464 = vunpack.c.l.b16 %v328
    %v465 = vunpack.c.l.b16 %v329
    %v466 = vunpack.c.l.b16 %v330
    %v467 = vunpack.c.l.b16 %v331
    %v468 = vunpack.c.l.b16 %v332
    %v469 = vunpack.c.l.b16 %v333
    %v470 = vunpack.c.l.b16 %v334
    %v471 = vpack.c.b16 %v456, %v455
    %v472 = vpack.c.b16 %v458, %v457
    %v473 = vpack.c.b16 %v460, %v459
    %v474 = vpack.c.b16 %v462, %v461
    %v475 = vpack.c.b16 %v464, %v463
    %v476 = vpack.c.b16 %v466, %v465
    %v477 = vpack.c.b16 %v468, %v467
    %v478 = vpack.c.b16 %v470, %v469
    %487 = vmatpush.bf16.msra.mxu0 %v342
    %488 = vmatpush.bf16.msra.mxu0 %v341
    %489 = vmatpush.bf16.msra.mxu0 %v340
    %490 = vmatpush.bf16.msra.mxu0 %v339
    %491 = vmatpush.bf16.msra.mxu0 %v338
    %492 = vmatpush.bf16.msra.mxu0 %v337
    %493 = vmatpush.bf16.msra.mxu0 %v336
    %494 = vmatpush.bf16.msra.mxu0 %v335
    %495 = vmatmul.bf16.gmra.mxu0 %v471
    %v496 = vpop.f32.mrf.mxu0
    %v497 = vadd.f32 %v362, %v496
    %v498 = vpop.f32.mrf.mxu0
    %v499 = vadd.f32 %v367, %v498
    %500 = vmatmul.bf16.gmra.mxu0 %v472
    %v501 = vpop.f32.mrf.mxu0
    %v502 = vadd.f32 %v372, %v501
    %v503 = vpop.f32.mrf.mxu0
    %v504 = vadd.f32 %v377, %v503
    %505 = vmatmul.bf16.gmra.mxu0 %v473
    %v506 = vpop.f32.mrf.mxu0
    %v507 = vadd.f32 %v382, %v506
    %v508 = vpop.f32.mrf.mxu0
    %v509 = vadd.f32 %v387, %v508
    %510 = vmatmul.bf16.gmra.mxu0 %v474
    %v511 = vpop.f32.mrf.mxu0
    %v512 = vadd.f32 %v392, %v511
    %v513 = vpop.f32.mrf.mxu0
    %v514 = vadd.f32 %v397, %v513
    %515 = vmatmul.bf16.gmra.mxu0 %v475
    %v516 = vpop.f32.mrf.mxu0
    %v517 = vadd.f32 %v402, %v516
    %v518 = vpop.f32.mrf.mxu0
    %v519 = vadd.f32 %v407, %v518
    %520 = vmatmul.bf16.gmra.mxu0 %v476
    %v521 = vpop.f32.mrf.mxu0
    %v522 = vadd.f32 %v412, %v521
    %v523 = vpop.f32.mrf.mxu0
    %v524 = vadd.f32 %v417, %v523
    %525 = vmatmul.bf16.gmra.mxu0 %v477
    %v526 = vpop.f32.mrf.mxu0
    %v527 = vadd.f32 %v422, %v526
    %v528 = vpop.f32.mrf.mxu0
    %v529 = vadd.f32 %v427, %v528
    %530 = vmatmul.bf16.gmra.mxu0 %v478
    %v531 = vpop.f32.mrf.mxu0
    %v532 = vadd.f32 %v432, %v531
    %v533 = vpop.f32.mrf.mxu0
    %v534 = vadd.f32 %v437, %v533
    %535 = vdwg.mxu0
    %v536 = vmax.f32 %v497, 0.0
    %v537 = vmax.f32 %v499, 0.0
    %v538 = vmax.f32 %v502, 0.0
    %v539 = vmax.f32 %v504, 0.0
    %v540 = vmax.f32 %v507, 0.0
    %v541 = vmax.f32 %v509, 0.0
    %v542 = vmax.f32 %v512, 0.0
    %v543 = vmax.f32 %v514, 0.0
    %v544 = vmax.f32 %v517, 0.0
    %v545 = vmax.f32 %v519, 0.0
    %v546 = vmax.f32 %v522, 0.0
    %v547 = vmax.f32 %v524, 0.0
    %v548 = vmax.f32 %v527, 0.0
    %v549 = vmax.f32 %v529, 0.0
    %v550 = vmax.f32 %v532, 0.0
    %v551 = vmax.f32 %v534, 0.0
    %v552 = vld [vmem:[%s6] sm:$0xf]
    %v553 = vld [vmem:[%s6 + $0x4] sm:$0xf]
    %v554 = vld [vmem:[%s6 + $0x8] sm:$0xf]
    %v555 = vld [vmem:[%s6 + $0xc] sm:$0xf]
    %v556 = vld [vmem:[%s6 + $0x10] sm:$0xf]
    %v557 = vpack.c.bf16 %v537, %v536
    %v558 = vpack.c.bf16 %v539, %v538
    %v559 = vpack.c.bf16 %v541, %v540
    %v560 = vpack.c.bf16 %v543, %v542
    %v561 = vpack.c.bf16 %v545, %v544
    %v562 = vpack.c.bf16 %v547, %v546
    %v563 = vpack.c.bf16 %v549, %v548
    %v564 = vpack.c.bf16 %v551, %v550
    %v565 = vld [vmem:[%s7] sm:$0xff]
    %v566 = vld [vmem:[%s7 + $0x8] sm:$0xff]
    %v567 = vld [vmem:[%s7 + $0x10] sm:$0xff]
    %v568 = vld [vmem:[%s7 + $0x18] sm:$0xff]
    %v569 = vld [vmem:[%s7 + $0x20] sm:$0xff]
    %571 = vset.pattern.permute.xlu0 0
    %572 = vperm.xlu0 %571, %v565
    %v573 = vpop.permute.xlu0 %572
    %576 = vset.pattern.permute.xlu0 0
    %577 = vperm.xlu0 %576, %v566
    %v578 = vpop.permute.xlu0 %577
    %581 = vset.pattern.permute.xlu0 0
    %582 = vperm.xlu0 %581, %v567
    %v583 = vpop.permute.xlu0 %582
    %586 = vset.pattern.permute.xlu0 0
    %587 = vperm.xlu0 %586, %v568
    %v588 = vpop.permute.xlu0 %587
    %591 = vset.pattern.permute.xlu0 0
    %592 = vperm.xlu0 %591, %v569
    %v593 = vpop.permute.xlu0 %592
    %v600 = vunpack.c.l.b16 %v552
    %v601 = vunpack.c.l.b16 %v553
    %v602 = vunpack.c.l.b16 %v554
    %v603 = vunpack.c.l.b16 %v555
    %v604 = vunpack.c.l.b16 %v556
    %v605 = vpack.c.b16 %v601, %v600
    %v606 = vpack.c.b16 %v603, %v602
    %v607 = vpack.c.b16 %v604, %v604
    %611 = vmatpush.bf16.msra.mxu0 %v564
    %612 = vmatpush.bf16.msra.mxu0 %v563
    %613 = vmatpush.bf16.msra.mxu0 %v562
    %614 = vmatpush.bf16.msra.mxu0 %v561
    %615 = vmatpush.bf16.msra.mxu0 %v560
    %616 = vmatpush.bf16.msra.mxu0 %v559
    %617 = vmatpush.bf16.msra.mxu0 %v558
    %618 = vmatpush.bf16.msra.mxu0 %v557
    %619 = vmatmul.bf16.gmra.mxu0 %v605
    %v620 = vpop.f32.mrf.mxu0
    %v621 = vadd.f32 %v573, %v620
    %v622 = vpop.f32.mrf.mxu0
    %v623 = vadd.f32 %v578, %v622
    %624 = vmatmul.bf16.gmra.mxu0 %v606
    %v625 = vpop.f32.mrf.mxu0
    %v626 = vadd.f32 %v583, %v625
    %v627 = vpop.f32.mrf.mxu0
    %v628 = vadd.f32 %v588, %v627
    %629 = vmatmul.bf16.gmra.mxu0 %v607
    %v630 = vpop.f32.mrf.mxu0
    %v631 = vadd.f32 %v593, %v630
    %v632 = vpop.f32.mrf.mxu0
    %633 = vdwg.mxu0
    %v634 = vmin.f32 %v628, 4.1351666
    %v635 = vmin.f32 %v631, 4.1351666
    %v636 = vrot.slane %v621, 4
    %v637 = vmax.f32 %v621, %v636
    %v638 = vrot.slane %v637, 2
    %v639 = vmax.f32 %v637, %v638
    %v640 = vrot.slane %v639, 1
    %v641 = vmax.f32 %v639, %v640
    %v642 = vsub.f32 %v621, %v641
    %v643 = vmul.f32 %v642, 1.442695
    %v644 = vpow.pop %v643
    %v645 = vrot.slane %v644, 4
    %v646 = vadd.f32 %v644, %v645
    %v647 = vrot.slane %v646, 2
    %v648 = vadd.f32 %v646, %v647
    %v649 = vrot.slane %v648, 1
    %v650 = vadd.f32 %v648, %v649
    %v651 = vrcp.pop %v650
    %v652 = vmul.f32 %v650, %v651
    %v653 = vsub.f32 1.0, %v652
    %v654 = vmul.f32 %v651, %v653
    %v655 = vadd.f32 %v651, %v654
    %vm656 = vweird.f32 %v650
    %vm657 = vweird.f32 %v651
    %vm658 = vmor %vm656, %vm657
    %v659 = vsel %vm658, %v651, %v655
    %v660 = vand.u32 2147483647, %v650
    %vm661 = vcmp.eq.f32.partialorder %v660, 8.507059e+37
    %v662 = vand.u32 %v650, 2147483648
    %v663 = vor.u32 1.1754944e-38, %v662
    %v664 = vsel %vm661, %v663, %v659
    %v665 = vmul.f32 %v644, %v664
    %v666 = vld [vmem:[%s1] sm:$0x1]
    %v667 = vld [vmem:[%s1 + $0x1] sm:$0x1]
    %v668 = vld [vmem:[%s1 + $0x2] sm:$0x1]
    %v669 = vld [vmem:[%s1 + $0x3] sm:$0x1]
    %v670 = vsub.f32 %v668, %v666
    %v671 = vsub.f32 %v669, %v667
    %v672 = vmul.f32 %v670, 0.5
    %v673 = vadd.f32 %v666, %v672
    %v674 = vmul.f32 %v671, 0.5
    %v675 = vadd.f32 %v667, %v674
    %v676 = vperm.slane %v670, 0
    %v677 = vmul.f32 %v623, %v676
    %v678 = vperm.slane %v673, 0
    %v679 = vadd.f32 %v677, %v678
    %v680 = vperm.slane %v671, 0
    %v681 = vmul.f32 %v626, %v680
    %v682 = vperm.slane %v675, 0
    %v683 = vadd.f32 %v681, %v682
    %v684 = vmul.f32 %v634, 1.442695
    %v685 = vpow.pop %v684
    %v686 = vmul.f32 %v685, %v676
    %v687 = vmul.f32 %v635, 1.442695
    %v688 = vpow.pop %v687
    %v689 = vmul.f32 %v688, %v680
    %v690 = vmul.f32 %v686, 0.5
    %v691 = vsub.f32 %v679, %v690
    %v692 = vmax.f32 %v691, 0.0
    %v693 = vmin.f32 %v692, 32.0
    %v694 = vmul.f32 %v689, 0.5
    %v695 = vsub.f32 %v683, %v694
    %v696 = vmax.f32 %v695, 0.0
    %v697 = vmin.f32 %v696, 32.0
    %v698 = vadd.f32 %v679, %v690
    %v699 = vmax.f32 %v698, 0.0
    %v700 = vmin.f32 %v699, 32.0
    %v701 = vadd.f32 %v683, %v694
    %v702 = vmax.f32 %v701, 0.0
    %v703 = vmin.f32 %v702, 32.0
    %704 = vst [vmem:[#allocation2] sm:$0xff] %v665
    %705 = vst [vmem:[#allocation2 + $0x8] sm:$0xff] %v693
    %706 = vst [vmem:[#allocation2 + $0x10] sm:$0xff] %v697
    %707 = vst [vmem:[#allocation2 + $0x18] sm:$0xff] %v700
    %708 = vst [vmem:[#allocation2 + $0x20] sm:$0xff] %v703
    // Predicated region
    $region34: #{_roi_head_device.1} parent=1 // pred_check
      _
    $region35: #{_roi_head_device.1} parent=1 // pred_check_branch
      %710 = sbr.rel (0) target = $region37
    $region36: #{_roi_head_device.1} parent=1 // pred_region
      %712 = vsyncadd [#allocation3], 0
      %s713 = sshll.u32 [#allocation2], 4
      %s714 = int_to_ptr.vmem [resolvable:$true] %s713
      %s715 = sshll.u32 %s8, 4
      %s716 = int_to_ptr.hbm [resolvable:$true] %s715
      %721 = dma.vmem_to_hbm [thread:$0]  %s714, 640, %s716, [#allocation3], 128, 128, 8
    $region37: #{_roi_head_device.1} parent=1 // pred_fallthru
      _
    // Predicated region
    $region38: #{_roi_head_device.1} parent=1 // pred_check
      _
    $region39: #{_roi_head_device.1} parent=1 // pred_check_branch
      %723 = sbr.rel (0) target = $region41
    $region40: #{_roi_head_device.1} parent=1 // pred_region
      %725 = dma.done [#allocation3], 640
    $region41: #{_roi_head_device.1} parent=1 // pred_fallthru
      _
    %726 = vsyncpa [#allocation3], 1

</llo_original>
